<compile_context>
chip_gen: v5e
topology: v5e:2x2
jax: 0.10.0
libtpu: 0.0.40
codegen_flags: <defaults>
</compile_context>

<pallas_src>
import jax
import jax.numpy as jnp
import numpy as np
from jax.experimental import pallas as pl
from jax.experimental.pallas import tpu as pltpu


# ----------------------------------------------------------------------------
# Kernels
# ----------------------------------------------------------------------------
def _mlp(x_ref, w_ref, b_ref):
    """Static-unrolled 4-layer chain: (TB,P) @ (P,P) per layer on the MXU.

    Compute dtype of the operands follows x_ref/w_ref (bf16 or f32); the
    accumulator, bias-add and ReLU are always f32.  Padded columns stay
    exactly zero (zero-padded weights/biases), padded rows contribute zero.
    Returns the f32 fused-head output: lanes 0:3 = value, lane 3 = action.
    """
    n_layers = w_ref.shape[0]          # static (== 4)
    h = x_ref[...]                     # (TB, P) in compute dtype
    b_all = b_ref[...]                 # (L, P) f32
    acc = None
    for l in range(n_layers):          # static unroll; serial MXU chain
        acc = jnp.dot(h, w_ref[l], preferred_element_type=jnp.float32)
        acc = jnp.maximum(acc + b_all[l], 0.0)      # f32 bias + ReLU
        h = acc.astype(x_ref.dtype)                 # back to compute dtype
    return acc                                      # (TB, P) f32


def dueling_fused_kernel(x_ref, w_ref, b_ref, out_ref):
    """Gridless path: whole batch in one shot, dueling combine in-kernel.

    out_ref is (B, P) lane-dense; lanes 0:3 hold Q, the rest is junk and is
    sliced away in the wrapper.  mean(action) is over the full (un-padded)
    batch, exactly like torch.mean in the reference.
    """
    acc = _mlp(x_ref, w_ref, b_ref)                 # (B, P) f32
    action = acc[:, 3:4]                            # (B, 1)
    inv_batch = 1.0 / x_ref.shape[0]                # static python float
    out_ref[...] = acc + (action - jnp.sum(action) * inv_batch)


def dueling_heads_kernel(x_ref, w_ref, b_ref, out_ref):
    """Batch-tiled path: emit raw fused-head output; batch-coupled mean and
    the dueling combine happen in the wrapper (over un-padded rows only)."""
    out_ref[...] = _mlp(x_ref, w_ref, b_ref)


# ----------------------------------------------------------------------------
# Host-side packing + wrapper
# ----------------------------------------------------------------------------
def pack_params(params, in_dim, *, compute_dtype=jnp.bfloat16):
    """Repack the 10 PyTorch tensors into (L,P,P) weights + (L,P) f32 biases."""
    (w1, b1, w2, b2, wfc, bfc, wv, bv, wa, ba) = params
    half = w2.shape[1] // 2
    layers = [
        (w1, b1),                                        # h_layer1
        (w2[:, :half], b2[:, :half]),                    # h_layer2 (kept half)
        (wfc, bfc),                                      # fc1
        (jnp.concatenate([wv, wa], axis=1),              # fused value|action
         jnp.concatenate([bv, ba], axis=1)),
    ]
    dims = [in_dim] + [d for w, _ in layers for d in w.shape]
    P = int(-(-max(dims) // 128) * 128)                  # lane-dense width (128)
    w_packed = jnp.stack(
        [jnp.pad(w, ((0, P - w.shape[0]), (0, P - w.shape[1]))) for w, _ in layers])
    b_packed = jnp.stack([jnp.pad(b[0], (0, P - b.shape[1])) for _, b in layers])
    return w_packed.astype(compute_dtype), b_packed.astype(jnp.float32), P


def dueling_dqn_forward(state, w_packed, b_packed, *, batch_tile=None):
    """state: (B, in_dim) f32.  Returns Q values (B, 3) f32.

    batch_tile=None  -> gridless single-shot (latency path, small B).
    batch_tile=int   -> 1-D parallel batch grid (throughput path, large B);
                        weights/biases stay VMEM-resident via constant
                        index_maps, dueling combine done in the wrapper so the
                        batch-coupled mean(action) stays globally correct.
    """
    B, in_dim = state.shape
    L, P, _ = w_packed.shape
    out_dim = 3

    x = state.astype(w_packed.dtype)
    if in_dim < P:
        x = jnp.pad(x, ((0, 0), (0, P - in_dim)))       # zero-pad features

    vmem = pl.BlockSpec(memory_space=pltpu.MemorySpace.VMEM)

    if batch_tile is None or batch_tile >= B:
        out = pl.pallas_call(
            dueling_fused_kernel,
            out_shape=jax.ShapeDtypeStruct((B, P), jnp.float32),
            in_specs=[vmem, vmem, vmem],
            out_specs=vmem,
        )(x, w_packed, b_packed)
        return out[:, :out_dim]

    # ---- batch-tiled throughput path ----
    n_tiles = pl.cdiv(B, batch_tile)
    Bp = n_tiles * batch_tile
    if Bp > B:                                           # pad rows to tile multiple
        x = jnp.pad(x, ((0, Bp - B), (0, 0)))

    heads = pl.pallas_call(
        dueling_heads_kernel,
        out_shape=jax.ShapeDtypeStruct((Bp, P), jnp.float32),
        grid=(n_tiles,),
        in_specs=[
            pl.BlockSpec((batch_tile, P), lambda i: (i, 0)),
            pl.BlockSpec((L, P, P), lambda i: (0, 0, 0)),   # VMEM-resident weights
            pl.BlockSpec((L, P), lambda i: (0, 0)),          # VMEM-resident biases
        ],
        out_specs=pl.BlockSpec((batch_tile, P), lambda i: (i, 0)),
        compiler_params=pltpu.CompilerParams(
            dimension_semantics=("parallel",)),
    )(x, w_packed, b_packed)

    heads = heads[:B]                                    # drop padded rows BEFORE the mean
    value = heads[:, :out_dim]
    action = heads[:, out_dim:out_dim + 1]
    return value + action - jnp.mean(action)             # global batch-coupled mean


# ----------------------------------------------------------------------------
# Reference + init (shapes follow the PyTorch __init__ / forward)
# ----------------------------------------------------------------------------
def init_params(key, n_angle, n_actions, n_hidden1, n_hidden2):
    del n_actions  # heads have fixed output sizes (3 and 1) in the reference
    inputs = n_angle * 4
    dims = [
        (inputs, n_hidden1),        # h_layer1
        (n_hidden1, n_hidden2),     # h_layer2
        (n_hidden2 // 2, 8),        # fc1
        (8, 3),                     # valuelayer
        (8, 1),                     # actionlayer
    ]
    params = []
    for (din, dout) in dims:
        key, kw, kb = jax.random.split(key, 3)
        scale = 1.0 / np.sqrt(din)
        w = jax.random.uniform(kw, (din, dout), jnp.float32, -scale, scale)
        b = jax.random.uniform(kb, (1, dout), jnp.float32, -scale, scale)
        params.extend([w, b])
    return tuple(params)


def reference_forward(state, params):
    """Pure-JAX reference mirroring the PyTorch forward exactly."""
    (w1, b1, w2, b2, wfc, bfc, wv, bv, wa, ba) = params
    x = jnp.maximum(state @ w1 + b1, 0.0)
    x = jnp.maximum(x @ w2 + b2, 0.0)
    half = x.shape[1] // 2
    x1 = x[:, :half]
    f = jnp.maximum(x1 @ wfc + bfc, 0.0)
    value = jnp.maximum(f @ wv + bv, 0.0)
    action = jnp.maximum(f @ wa + ba, 0.0)
    return value + action - jnp.mean(action)


if __name__ == "__main__":
    n_angle, n_actions = 8, 3
    n_hidden1, n_hidden2 = 64, 64
    batch = 8

    key = jax.random.PRNGKey(0)
    key, kx = jax.random.split(key)
    state = jax.random.normal(kx, (batch, n_angle * 4), jnp.float32)
    params = init_params(key, n_angle, n_actions, n_hidden1, n_hidden2)
    q_ref = reference_forward(state, params)

    # 1) f32 packing: strict numerical parity with the PyTorch-equivalent ref.
    w_f32, bias_f32, _ = pack_params(params, in_dim=n_angle * 4,
                                     compute_dtype=jnp.float32)
    q_f32 = jax.block_until_ready(dueling_dqn_forward(state, w_f32, bias_f32))
    np.testing.assert_allclose(np.asarray(q_f32), np.asarray(q_ref),
                               rtol=1e-5, atol=1e-5)

    # 2) bf16 packing (performance default): single-pass MXU ops, half the
    #    weight DMA; checked at bf16-appropriate tolerance.
    w_bf16, bias_f32b, _ = pack_params(params, in_dim=n_angle * 4,
                                       compute_dtype=jnp.bfloat16)
    q_bf16 = jax.block_until_ready(dueling_dqn_forward(state, w_bf16, bias_f32b))
    np.testing.assert_allclose(np.asarray(q_bf16), np.asarray(q_ref),
                               rtol=5e-2, atol=2e-2)
    assert q_bf16.shape == (batch, 3)

    # 3) Batch-tiled throughput path (parallel grid, VMEM-resident weights,
    #    non-multiple batch to exercise row padding + global-mean handling).
    big_b = 200
    key, kb = jax.random.split(key)
    big_state = jax.random.normal(kb, (big_b, n_angle * 4), jnp.float32)
    q_big = jax.block_until_ready(
        dueling_dqn_forward(big_state, w_bf16, bias_f32b, batch_tile=128))
    q_big_ref = reference_forward(big_state, params)
    np.testing.assert_allclose(np.asarray(q_big), np.asarray(q_big_ref),
                               rtol=5e-2, atol=2e-2)
    assert q_big.shape == (big_b, 3)

    print("KERNEL_OK")
</pallas_src>

<mosaic_0001>
module attributes {stable_mosaic.version = 11 : i64} {
  func.func @dueling_fused_kernel(%arg0: memref<8x128xf32, #tpu.memory_space<vmem>>, %arg1: memref<4x128x128xf32, #tpu.memory_space<vmem>>, %arg2: memref<4x128xf32, #tpu.memory_space<vmem>>, %arg3: memref<8x128xf32, #tpu.memory_space<vmem>>) attributes {dimension_semantics = [], scalar_prefetch = 0 : i64, scratch_operands = 0 : i64, tpu.core_type = #tpu.core_type<tc>} {
    %c0 = arith.constant 0 : index
    %c0_0 = arith.constant 0 : index
    %0 = vector.load %arg0[%c0, %c0_0] : memref<8x128xf32, #tpu.memory_space<vmem>>, vector<8x128xf32>
    %c0_1 = arith.constant 0 : index
    %c0_2 = arith.constant 0 : index
    %1 = vector.load %arg2[%c0_1, %c0_2] : memref<4x128xf32, #tpu.memory_space<vmem>>, vector<4x128xf32>
    %c0_3 = arith.constant 0 : index
    %c0_4 = arith.constant 0 : index
    %c0_5 = arith.constant 0 : index
    %2 = vector.load %arg1[%c0_3, %c0_4, %c0_5] : memref<4x128x128xf32, #tpu.memory_space<vmem>>, vector<1x128x128xf32>
    %3 = vector.shape_cast %2 : vector<1x128x128xf32> to vector<128x128xf32>
    %cst = arith.constant dense<0.000000e+00> : vector<8x128xf32>
    %4 = tpu.matmul %0, %3, %cst {dimension_numbers = #tpu.dot_dimension_numbers<[1], [0], [0], [1], [0, 0, 1, 1], [], []>} : vector<8x128xf32>, vector<128x128xf32>, vector<8x128xf32> -> vector<8x128xf32>
    %5 = vector.extract_strided_slice %1 {offsets = [0, 0], sizes = [1, 128], strides = [1, 1]} : vector<4x128xf32> to vector<1x128xf32>
    %6 = vector.shape_cast %5 : vector<1x128xf32> to vector<128xf32>
    %7 = vector.shape_cast %6 : vector<128xf32> to vector<1x128xf32>
    %8 = vector.broadcast %7 : vector<1x128xf32> to vector<8x128xf32>
    %9 = arith.addf %4, %8 : vector<8x128xf32>
    %cst_6 = arith.constant 0.000000e+00 : f32
    %10 = vector.broadcast %cst_6 : f32 to vector<8x128xf32>
    %11 = arith.maximumf %9, %10 : vector<8x128xf32>
    %c1 = arith.constant 1 : index
    %c0_7 = arith.constant 0 : index
    %c0_8 = arith.constant 0 : index
    %12 = vector.load %arg1[%c1, %c0_7, %c0_8] : memref<4x128x128xf32, #tpu.memory_space<vmem>>, vector<1x128x128xf32>
    %13 = vector.shape_cast %12 : vector<1x128x128xf32> to vector<128x128xf32>
    %cst_9 = arith.constant dense<0.000000e+00> : vector<8x128xf32>
    %14 = tpu.matmul %11, %13, %cst_9 {dimension_numbers = #tpu.dot_dimension_numbers<[1], [0], [0], [1], [0, 0, 1, 1], [], []>} : vector<8x128xf32>, vector<128x128xf32>, vector<8x128xf32> -> vector<8x128xf32>
    %15 = vector.extract_strided_slice %1 {offsets = [1, 0], sizes = [1, 128], strides = [1, 1]} : vector<4x128xf32> to vector<1x128xf32>
    %16 = vector.shape_cast %15 : vector<1x128xf32> to vector<128xf32>
    %17 = vector.shape_cast %16 : vector<128xf32> to vector<1x128xf32>
    %18 = vector.broadcast %17 : vector<1x128xf32> to vector<8x128xf32>
    %19 = arith.addf %14, %18 : vector<8x128xf32>
    %cst_10 = arith.constant 0.000000e+00 : f32
    %20 = vector.broadcast %cst_10 : f32 to vector<8x128xf32>
    %21 = arith.maximumf %19, %20 : vector<8x128xf32>
    %c2 = arith.constant 2 : index
    %c0_11 = arith.constant 0 : index
    %c0_12 = arith.constant 0 : index
    %22 = vector.load %arg1[%c2, %c0_11, %c0_12] : memref<4x128x128xf32, #tpu.memory_space<vmem>>, vector<1x128x128xf32>
    %23 = vector.shape_cast %22 : vector<1x128x128xf32> to vector<128x128xf32>
    %cst_13 = arith.constant dense<0.000000e+00> : vector<8x128xf32>
    %24 = tpu.matmul %21, %23, %cst_13 {dimension_numbers = #tpu.dot_dimension_numbers<[1], [0], [0], [1], [0, 0, 1, 1], [], []>} : vector<8x128xf32>, vector<128x128xf32>, vector<8x128xf32> -> vector<8x128xf32>
    %25 = vector.extract_strided_slice %1 {offsets = [2, 0], sizes = [1, 128], strides = [1, 1]} : vector<4x128xf32> to vector<1x128xf32>
    %26 = vector.shape_cast %25 : vector<1x128xf32> to vector<128xf32>
    %27 = vector.shape_cast %26 : vector<128xf32> to vector<1x128xf32>
    %28 = vector.broadcast %27 : vector<1x128xf32> to vector<8x128xf32>
    %29 = arith.addf %24, %28 : vector<8x128xf32>
    %cst_14 = arith.constant 0.000000e+00 : f32
    %30 = vector.broadcast %cst_14 : f32 to vector<8x128xf32>
    %31 = arith.maximumf %29, %30 : vector<8x128xf32>
    %c3 = arith.constant 3 : index
    %c0_15 = arith.constant 0 : index
    %c0_16 = arith.constant 0 : index
    %32 = vector.load %arg1[%c3, %c0_15, %c0_16] : memref<4x128x128xf32, #tpu.memory_space<vmem>>, vector<1x128x128xf32>
    %33 = vector.shape_cast %32 : vector<1x128x128xf32> to vector<128x128xf32>
    %cst_17 = arith.constant dense<0.000000e+00> : vector<8x128xf32>
    %34 = tpu.matmul %31, %33, %cst_17 {dimension_numbers = #tpu.dot_dimension_numbers<[1], [0], [0], [1], [0, 0, 1, 1], [], []>} : vector<8x128xf32>, vector<128x128xf32>, vector<8x128xf32> -> vector<8x128xf32>
    %35 = vector.extract_strided_slice %1 {offsets = [3, 0], sizes = [1, 128], strides = [1, 1]} : vector<4x128xf32> to vector<1x128xf32>
    %36 = vector.shape_cast %35 : vector<1x128xf32> to vector<128xf32>
    %37 = vector.shape_cast %36 : vector<128xf32> to vector<1x128xf32>
    %38 = vector.broadcast %37 : vector<1x128xf32> to vector<8x128xf32>
    %39 = arith.addf %34, %38 : vector<8x128xf32>
    %cst_18 = arith.constant 0.000000e+00 : f32
    %40 = vector.broadcast %cst_18 : f32 to vector<8x128xf32>
    %41 = arith.maximumf %39, %40 : vector<8x128xf32>
    %42 = vector.extract_strided_slice %41 {offsets = [0, 3], sizes = [8, 1], strides = [1, 1]} : vector<8x128xf32> to vector<8x1xf32>
    %43 = vector.shape_cast %42 : vector<8x1xf32> to vector<1x8x1xf32>
    %cst_19 = arith.constant dense<0.000000e+00> : vector<1xf32>
    %44 = vector.multi_reduction <add>, %43, %cst_19 [1, 2] : vector<1x8x1xf32> to vector<1xf32>
    %45 = vector.shape_cast %44 : vector<1xf32> to vector<1x1x1xf32>
    %46 = vector.extract %45[0, 0, 0] : f32 from vector<1x1x1xf32>
    %cst_20 = arith.constant 1.250000e-01 : f32
    %47 = arith.mulf %46, %cst_20 : f32
    %48 = vector.broadcast %47 : f32 to vector<8x1xf32>
    %49 = arith.subf %42, %48 : vector<8x1xf32>
    %50 = vector.broadcast %49 : vector<8x1xf32> to vector<8x128xf32>
    %51 = arith.addf %41, %50 : vector<8x128xf32>
    %c0_21 = arith.constant 0 : index
    %c0_22 = arith.constant 0 : index
    %52 = vector.load %arg3[%c0_21, %c0_22] : memref<8x128xf32, #tpu.memory_space<vmem>>, vector<8x128xf32>
    tpu.vector_store %arg3[%c0_21, %c0_22], %51 {strides = array<i32>} : memref<8x128xf32, #tpu.memory_space<vmem>>, vector<8x128xf32>,
    return
  }
}

</mosaic_0001>

<llo_original>
// kernel: tpu_custom_call.1
$region0: #{tpu_custom_call.1}
  #allocation0 [shape = 'u32[]', space=smem, size = 0x4, offset = 0x4, fixed_abs, tag = 'smem constant byte address 0x4 - core index']
  #allocation1 [shape = 'u32[72,128]{1,0:T(1,128)}', space=vmem, size = 0x9000, scoped, tag = 'internal scratch']
  %s0 = inlined_call_operand.hbm [shape: f32[8,128], index: 0, kind: input, shape index: {}]
  %s1 = inlined_call_operand.hbm [shape: f32[4,128,128], index: 1, kind: input, shape index: {}]
  %s2 = inlined_call_operand.hbm [shape: f32[4,128], index: 2, kind: input, shape index: {}]
  %s3 = inlined_call_operand.hbm [shape: f32[8,128], index: 3, kind: output, shape index: {}]
  %s4 = sld [smem:[#allocation0]]
  $region34: #{tpu_custom_call.1} parent=0
    _
  %s6 = ssub.s32 1, %s4
  %s7 = scalar_select 0, %s6, %s4
  $region1: #{tpu_custom_call.1} parent=0
    #allocation2 [shape = 'u8[4096]{0}', space=vmem, size = 0x1000, scoped, tag = 'input window, operand 0, single buffered']
    #allocation3 [shape = 's32[1]{0}', space=sflag, size = 0x4, scoped, tag = 'scoped memory for tpu_custom_call.1']
    #allocation4 [shape = 's32[1]{0}', space=sflag, size = 0x4, scoped, tag = 'scoped memory for tpu_custom_call.1']
    #allocation5 [shape = 'u8[262144]{0}', space=vmem, size = 0x40000, scoped, tag = 'input window, operand 1, single buffered']
    #allocation6 [shape = 's32[1]{0}', space=sflag, size = 0x4, scoped, tag = 'scoped memory for tpu_custom_call.1']
    #allocation7 [shape = 'u8[2048]{0}', space=vmem, size = 0x800, scoped, tag = 'input window, operand 2, single buffered']
    #allocation8 [shape = 'u8[4096]{0}', space=vmem, size = 0x1000, scoped, tag = 'output window, operand 0, single buffered']
    %8 = vsyncpa [#allocation3], 0
    %9 = vsyncpa [#allocation6], 0
    %10 = vsyncpa [#allocation4], 0
    // Predicated region
    $region2: #{tpu_custom_call.1} parent=1 // pred_check
      _
    $region3: #{tpu_custom_call.1} parent=1 // pred_check_branch
      %12 = sbr.rel (0) target = $region5
    $region4: #{tpu_custom_call.1} parent=1 // pred_region
      %14 = vsyncadd [#allocation3], 0
      %s16 = sshll.u32 %s0, 4
      %s17 = int_to_ptr.hbm [resolvable:$true] %s16
      %s18 = sshll.u32 [#allocation2], 4
      %s19 = int_to_ptr.vmem [resolvable:$true] %s18
      %21 = dma.hbm_to_vmem [thread:$0]  %s17, 128, %s19, [#allocation3]
    $region5: #{tpu_custom_call.1} parent=1 // pred_fallthru
      _
    // Predicated region
    $region6: #{tpu_custom_call.1} parent=1 // pred_check
      _
    $region7: #{tpu_custom_call.1} parent=1 // pred_check_branch
      %23 = sbr.rel (0) target = $region9
    $region8: #{tpu_custom_call.1} parent=1 // pred_region
      %25 = vsyncadd [#allocation6], 0
      %s26 = sshll.u32 %s1, 4
      %s27 = int_to_ptr.hbm [resolvable:$true] %s26
      %s28 = sshll.u32 [#allocation5], 4
      %s29 = int_to_ptr.vmem [resolvable:$true] %s28
      %34 = dma.hbm_to_vmem [thread:$0]  %s27, 8192, %s29, [#allocation6], 128, 128, 8
    $region9: #{tpu_custom_call.1} parent=1 // pred_fallthru
      _
    // Predicated region
    $region10: #{tpu_custom_call.1} parent=1 // pred_check
      _
    $region11: #{tpu_custom_call.1} parent=1 // pred_check_branch
      %36 = sbr.rel (0) target = $region13
    $region12: #{tpu_custom_call.1} parent=1 // pred_region
      %38 = vsyncadd [#allocation6], 0
      %s40 = sshll.u32 %s2, 4
      %s41 = int_to_ptr.hbm [resolvable:$true] %s40
      %s42 = sshll.u32 [#allocation7], 4
      %s43 = int_to_ptr.vmem [resolvable:$true] %s42
      %45 = dma.hbm_to_vmem [thread:$0]  %s41, 64, %s43, [#allocation6]
    $region13: #{tpu_custom_call.1} parent=1 // pred_fallthru
      _
    // Predicated region
    $region14: #{tpu_custom_call.1} parent=1 // pred_check
      _
    $region15: #{tpu_custom_call.1} parent=1 // pred_check_branch
      %47 = sbr.rel (0) target = $region17
    $region16: #{tpu_custom_call.1} parent=1 // pred_region
      %49 = dma.done [#allocation3], 128
    $region17: #{tpu_custom_call.1} parent=1 // pred_fallthru
      _
    // Predicated region
    $region18: #{tpu_custom_call.1} parent=1 // pred_check
      _
    $region19: #{tpu_custom_call.1} parent=1 // pred_check_branch
      %51 = sbr.rel (0) target = $region21
    $region20: #{tpu_custom_call.1} parent=1 // pred_region
      %53 = dma.done [#allocation6], 8192
    $region21: #{tpu_custom_call.1} parent=1 // pred_fallthru
      _
    // Predicated region
    $region22: #{tpu_custom_call.1} parent=1 // pred_check
      _
    $region23: #{tpu_custom_call.1} parent=1 // pred_check_branch
      %55 = sbr.rel (0) target = $region25
    $region24: #{tpu_custom_call.1} parent=1 // pred_region
      %57 = dma.done [#allocation6], 64
    $region25: #{tpu_custom_call.1} parent=1 // pred_fallthru
      _
    %v58 = vld [vmem:[#allocation2] sm:$0xff]
    %v59 = vld [vmem:[#allocation7] sm:$0xf]
    %v60 = vld [vmem:[#allocation5] sm:$0xff]
    %v61 = vld [vmem:[#allocation5 + $0x8] sm:$0xff]
    %v62 = vld [vmem:[#allocation5 + $0x10] sm:$0xff]
    %v63 = vld [vmem:[#allocation5 + $0x18] sm:$0xff]
    %v64 = vld [vmem:[#allocation5 + $0x20] sm:$0xff]
    %v65 = vld [vmem:[#allocation5 + $0x28] sm:$0xff]
    %v66 = vld [vmem:[#allocation5 + $0x30] sm:$0xff]
    %v67 = vld [vmem:[#allocation5 + $0x38] sm:$0xff]
    %v68 = vld [vmem:[#allocation5 + $0x40] sm:$0xff]
    %v69 = vld [vmem:[#allocation5 + $0x48] sm:$0xff]
    %v70 = vld [vmem:[#allocation5 + $0x50] sm:$0xff]
    %v71 = vld [vmem:[#allocation5 + $0x58] sm:$0xff]
    %v72 = vld [vmem:[#allocation5 + $0x60] sm:$0xff]
    %v73 = vld [vmem:[#allocation5 + $0x68] sm:$0xff]
    %v74 = vld [vmem:[#allocation5 + $0x70] sm:$0xff]
    %v75 = vld [vmem:[#allocation5 + $0x78] sm:$0xff]
    %v76 = vperm.slane %v59, 0
    %77 = vmatpush.msra.mxu0 %v75
    %78 = vmatpush.msra.mxu0 %v74
    %79 = vmatpush.msra.mxu0 %v73
    %80 = vmatpush.msra.mxu0 %v72
    %81 = vmatpush.msra.mxu0 %v71
    %82 = vmatpush.msra.mxu0 %v70
    %83 = vmatpush.msra.mxu0 %v69
    %84 = vmatpush.msra.mxu0 %v68
    %85 = vmatpush.msra.mxu0 %v67
    %86 = vmatpush.msra.mxu0 %v66
    %87 = vmatpush.msra.mxu0 %v65
    %88 = vmatpush.msra.mxu0 %v64
    %89 = vmatpush.msra.mxu0 %v63
    %90 = vmatpush.msra.mxu0 %v62
    %91 = vmatpush.msra.mxu0 %v61
    %92 = vmatpush.msra.mxu0 %v60
    %93 = vmatmul.f32.gmra.mxu0 %v58
    %v94 = vpop.f32.mrf.mxu0
    %v95 = vadd.f32 %v76, %v94
    %96 = vdwg.mxu0
    %v97 = vmax.f32 %v95, 0.0
    %s98 = scalar_lea.vmem [#allocation5], 128
    %v99 = vld [vmem:[%s98] sm:$0xff]
    %v100 = vld [vmem:[%s98 + $0x8] sm:$0xff]
    %v101 = vld [vmem:[%s98 + $0x10] sm:$0xff]
    %v102 = vld [vmem:[%s98 + $0x18] sm:$0xff]
    %v103 = vld [vmem:[%s98 + $0x20] sm:$0xff]
    %v104 = vld [vmem:[%s98 + $0x28] sm:$0xff]
    %v105 = vld [vmem:[%s98 + $0x30] sm:$0xff]
    %v106 = vld [vmem:[%s98 + $0x38] sm:$0xff]
    %v107 = vld [vmem:[%s98 + $0x40] sm:$0xff]
    %v108 = vld [vmem:[%s98 + $0x48] sm:$0xff]
    %v109 = vld [vmem:[%s98 + $0x50] sm:$0xff]
    %v110 = vld [vmem:[%s98 + $0x58] sm:$0xff]
    %v111 = vld [vmem:[%s98 + $0x60] sm:$0xff]
    %v112 = vld [vmem:[%s98 + $0x68] sm:$0xff]
    %v113 = vld [vmem:[%s98 + $0x70] sm:$0xff]
    %v114 = vld [vmem:[%s98 + $0x78] sm:$0xff]
    %v115 = vperm.slane %v59, 1
    %116 = vmatpush.msra.mxu0 %v114
    %117 = vmatpush.msra.mxu0 %v113
    %118 = vmatpush.msra.mxu0 %v112
    %119 = vmatpush.msra.mxu0 %v111
    %120 = vmatpush.msra.mxu0 %v110
    %121 = vmatpush.msra.mxu0 %v109
    %122 = vmatpush.msra.mxu0 %v108
    %123 = vmatpush.msra.mxu0 %v107
    %124 = vmatpush.msra.mxu0 %v106
    %125 = vmatpush.msra.mxu0 %v105
    %126 = vmatpush.msra.mxu0 %v104
    %127 = vmatpush.msra.mxu0 %v103
    %128 = vmatpush.msra.mxu0 %v102
    %129 = vmatpush.msra.mxu0 %v101
    %130 = vmatpush.msra.mxu0 %v100
    %131 = vmatpush.msra.mxu0 %v99
    %132 = vmatmul.f32.gmra.mxu0 %v97
    %v133 = vpop.f32.mrf.mxu0
    %v134 = vadd.f32 %v115, %v133
    %135 = vdwg.mxu0
    %v136 = vmax.f32 %v134, 0.0
    %s137 = scalar_lea.vmem [#allocation5], 256
    %v138 = vld [vmem:[%s137] sm:$0xff]
    %v139 = vld [vmem:[%s137 + $0x8] sm:$0xff]
    %v140 = vld [vmem:[%s137 + $0x10] sm:$0xff]
    %v141 = vld [vmem:[%s137 + $0x18] sm:$0xff]
    %v142 = vld [vmem:[%s137 + $0x20] sm:$0xff]
    %v143 = vld [vmem:[%s137 + $0x28] sm:$0xff]
    %v144 = vld [vmem:[%s137 + $0x30] sm:$0xff]
    %v145 = vld [vmem:[%s137 + $0x38] sm:$0xff]
    %v146 = vld [vmem:[%s137 + $0x40] sm:$0xff]
    %v147 = vld [vmem:[%s137 + $0x48] sm:$0xff]
    %v148 = vld [vmem:[%s137 + $0x50] sm:$0xff]
    %v149 = vld [vmem:[%s137 + $0x58] sm:$0xff]
    %v150 = vld [vmem:[%s137 + $0x60] sm:$0xff]
    %v151 = vld [vmem:[%s137 + $0x68] sm:$0xff]
    %v152 = vld [vmem:[%s137 + $0x70] sm:$0xff]
    %v153 = vld [vmem:[%s137 + $0x78] sm:$0xff]
    %v154 = vperm.slane %v59, 2
    %155 = vmatpush.msra.mxu0 %v153
    %156 = vmatpush.msra.mxu0 %v152
    %157 = vmatpush.msra.mxu0 %v151
    %158 = vmatpush.msra.mxu0 %v150
    %159 = vmatpush.msra.mxu0 %v149
    %160 = vmatpush.msra.mxu0 %v148
    %161 = vmatpush.msra.mxu0 %v147
    %162 = vmatpush.msra.mxu0 %v146
    %163 = vmatpush.msra.mxu0 %v145
    %164 = vmatpush.msra.mxu0 %v144
    %165 = vmatpush.msra.mxu0 %v143
    %166 = vmatpush.msra.mxu0 %v142
    %167 = vmatpush.msra.mxu0 %v141
    %168 = vmatpush.msra.mxu0 %v140
    %169 = vmatpush.msra.mxu0 %v139
    %170 = vmatpush.msra.mxu0 %v138
    %171 = vmatmul.f32.gmra.mxu0 %v136
    %v172 = vpop.f32.mrf.mxu0
    %v173 = vadd.f32 %v154, %v172
    %174 = vdwg.mxu0
    %v175 = vmax.f32 %v173, 0.0
    %s176 = scalar_lea.vmem [#allocation5], 384
    %v177 = vld [vmem:[%s176] sm:$0xff]
    %v178 = vld [vmem:[%s176 + $0x8] sm:$0xff]
    %v179 = vld [vmem:[%s176 + $0x10] sm:$0xff]
    %v180 = vld [vmem:[%s176 + $0x18] sm:$0xff]
    %v181 = vld [vmem:[%s176 + $0x20] sm:$0xff]
    %v182 = vld [vmem:[%s176 + $0x28] sm:$0xff]
    %v183 = vld [vmem:[%s176 + $0x30] sm:$0xff]
    %v184 = vld [vmem:[%s176 + $0x38] sm:$0xff]
    %v185 = vld [vmem:[%s176 + $0x40] sm:$0xff]
    %v186 = vld [vmem:[%s176 + $0x48] sm:$0xff]
    %v187 = vld [vmem:[%s176 + $0x50] sm:$0xff]
    %v188 = vld [vmem:[%s176 + $0x58] sm:$0xff]
    %v189 = vld [vmem:[%s176 + $0x60] sm:$0xff]
    %v190 = vld [vmem:[%s176 + $0x68] sm:$0xff]
    %v191 = vld [vmem:[%s176 + $0x70] sm:$0xff]
    %v192 = vld [vmem:[%s176 + $0x78] sm:$0xff]
    %v193 = vperm.slane %v59, 3
    %194 = vmatpush.msra.mxu0 %v192
    %195 = vmatpush.msra.mxu0 %v191
    %196 = vmatpush.msra.mxu0 %v190
    %197 = vmatpush.msra.mxu0 %v189
    %198 = vmatpush.msra.mxu0 %v188
    %199 = vmatpush.msra.mxu0 %v187
    %200 = vmatpush.msra.mxu0 %v186
    %201 = vmatpush.msra.mxu0 %v185
    %202 = vmatpush.msra.mxu0 %v184
    %203 = vmatpush.msra.mxu0 %v183
    %204 = vmatpush.msra.mxu0 %v182
    %205 = vmatpush.msra.mxu0 %v181
    %206 = vmatpush.msra.mxu0 %v180
    %207 = vmatpush.msra.mxu0 %v179
    %208 = vmatpush.msra.mxu0 %v178
    %209 = vmatpush.msra.mxu0 %v177
    %210 = vmatmul.f32.gmra.mxu0 %v175
    %v211 = vpop.f32.mrf.mxu0
    %v212 = vadd.f32 %v193, %v211
    %213 = vdwg.mxu0
    %v214 = vmax.f32 %v212, 0.0
    %216 = vrot.lane.b32.xlu0 %v214, 125
    %v217 = vpop.permute.xlu0 %216
    %vm219 = vcmask 7168
    %v220 = vsel %vm219, %v217, 0.0
    %221 = vadd.xlane.f32.xlu0 %v220
    %v222 = vpop.xlane.xlu0 %221
    %v223 = vrot.slane %v222, 4
    %v224 = vadd.f32 %v222, %v223
    %v225 = vrot.slane %v224, 2
    %v226 = vadd.f32 %v224, %v225
    %v227 = vrot.slane %v226, 1
    %v228 = vadd.f32 %v226, %v227
    %s229 = vtos %v228
    %s230 = smul.f32 %s229, 0.125
    %v231 = vstv %s230
    %v232 = vsub.f32 %v214, %v231
    %234 = vset.pattern.permute.xlu0 3
    %235 = vperm.xlu0 %234, %v232
    %v236 = vpop.permute.xlu0 %235
    %v238 = vadd.f32 %v214, %v236
    %239 = vst [vmem:[#allocation8] sm:$0xff] %v238
    // Predicated region
    $region26: #{tpu_custom_call.1} parent=1 // pred_check
      _
    $region27: #{tpu_custom_call.1} parent=1 // pred_check_branch
      %241 = sbr.rel (0) target = $region29
    $region28: #{tpu_custom_call.1} parent=1 // pred_region
      %243 = vsyncadd [#allocation4], 0
      %s245 = sshll.u32 [#allocation8], 4
      %s246 = int_to_ptr.vmem [resolvable:$true] %s245
      %s247 = sshll.u32 %s3, 4
      %s248 = int_to_ptr.hbm [resolvable:$true] %s247
      %250 = dma.vmem_to_hbm [thread:$0]  %s246, 128, %s248, [#allocation4]
    $region29: #{tpu_custom_call.1} parent=1 // pred_fallthru
      _
    // Predicated region
    $region30: #{tpu_custom_call.1} parent=1 // pred_check
      _
    $region31: #{tpu_custom_call.1} parent=1 // pred_check_branch
      %252 = sbr.rel (0) target = $region33
    $region32: #{tpu_custom_call.1} parent=1 // pred_region
      %254 = dma.done [#allocation4], 128
    $region33: #{tpu_custom_call.1} parent=1 // pred_fallthru
      _
    %255 = vsyncpa [#allocation3], 1
    %256 = vsyncpa [#allocation6], 1
    %257 = vsyncpa [#allocation4], 1

</llo_original>
